<compile_context>
chip_gen: v7x
topology: tpu7x:2x2x1
jax: 0.10.0
libtpu: 0.0.40
codegen_flags: <defaults>
</compile_context>

<pallas_src>
import functools

import jax
import jax.numpy as jnp
from jax.experimental import pallas as pl
from jax.experimental.pallas import tpu as pltpu


def _round_up(x, m):
    return (x + m - 1) // m * m


def _pad2(a, rows, cols):
    pr, pc = rows - a.shape[0], cols - a.shape[1]
    if pr or pc:
        a = jnp.pad(a, ((0, pr), (0, pc)))
    return a


def _policy_kernel(n_actions, x_ref, w1_ref, b1_ref, w2_ref, b2_ref, g_ref,
                   samp_ref, greedy_ref):
    # ---- MLP backbone: bf16 MXU operands, f32 accumulation ----
    x = x_ref[...].astype(jnp.bfloat16)
    h = jnp.dot(x, w1_ref[...], preferred_element_type=jnp.float32) + b1_ref[...]
    h = jnp.maximum(h, 0.0)
    logits = (jnp.dot(h.astype(jnp.bfloat16), w2_ref[...],
                      preferred_element_type=jnp.float32) + b2_ref[...])

    a_pad = logits.shape[-1]
    # Transpose once so actions sit on sublanes and batch on lanes: the argmax
    # result is then a lane-dense (1, TILE_B) row -> unmasked vector stores.
    lt = logits.T                                               # (A_pad, TILE_B)
    row = jax.lax.broadcasted_iota(jnp.int32, lt.shape, 0)
    lt = jnp.where(row < n_actions, lt, jnp.float32(-1e30))     # mask padded actions

    def lane_argmax(scores):
        mx = jnp.max(scores, axis=0, keepdims=True)             # (1, TILE_B)
        idx = jnp.min(jnp.where(scores == mx, row, a_pad),
                      axis=0, keepdims=True)
        # guard (NaN / all-masked pathologies): clamp into valid action range
        return jnp.minimum(idx, n_actions - 1).astype(jnp.int32)

    greedy_ref[...] = lane_argmax(lt)                           # argmax(logits)
    samp_ref[...] = lane_argmax(lt + g_ref[...])                # Gumbel-max sample


def categorical_policy_sample_and_greedy(obs, params, key, *, tile_b=None):
    """One fused pallas_call: returns (sampled_actions, greedy_actions), int32 [B]."""
    w1, b1, w2, b2 = params
    b1 = jnp.reshape(b1, (1, -1)).astype(jnp.float32)
    b2 = jnp.reshape(b2, (1, -1)).astype(jnp.float32)

    B, D = obs.shape
    H = w1.shape[1]
    A = w2.shape[1]

    d_pad = _round_up(D, 128)
    h_pad = _round_up(H, 128)
    a_pad = _round_up(A, 128)
    if tile_b is None:
        tile_b = min(512, _round_up(B, 128))
    b_pad = _round_up(B, tile_b)
    num_tiles = b_pad // tile_b

    obs_p = _pad2(obs.astype(jnp.float32), b_pad, d_pad)
    w1_p = _pad2(w1.astype(jnp.float32), d_pad, h_pad).astype(jnp.bfloat16)
    b1_p = _pad2(b1, 1, h_pad)
    w2_p = _pad2(w2.astype(jnp.float32), h_pad, a_pad).astype(jnp.bfloat16)
    b2_p = _pad2(b2, 1, a_pad)

    # Gumbel(0,1) noise, laid out (A_pad, B_pad) to match the transposed logits.
    gumbel = jax.random.gumbel(key, (a_pad, b_pad), jnp.float32)

    kernel = functools.partial(_policy_kernel, A)
    sampled, greedy = pl.pallas_call(
        kernel,
        grid=(num_tiles,),
        in_specs=[
            pl.BlockSpec((tile_b, d_pad), lambda i: (i, 0)),     # obs: batch-tiled
            pl.BlockSpec((d_pad, h_pad), lambda i: (0, 0)),      # w1: VMEM-resident
            pl.BlockSpec((1, h_pad), lambda i: (0, 0)),          # b1
            pl.BlockSpec((h_pad, a_pad), lambda i: (0, 0)),      # w2
            pl.BlockSpec((1, a_pad), lambda i: (0, 0)),          # b2
            pl.BlockSpec((a_pad, tile_b), lambda i: (0, i)),     # gumbel noise
        ],
        out_specs=(
            pl.BlockSpec((None, 1, tile_b), lambda i: (i, 0, 0)),  # sampled
            pl.BlockSpec((None, 1, tile_b), lambda i: (i, 0, 0)),  # greedy
        ),
        out_shape=(
            jax.ShapeDtypeStruct((num_tiles, 1, tile_b), jnp.int32),
            jax.ShapeDtypeStruct((num_tiles, 1, tile_b), jnp.int32),
        ),
        compiler_params=pltpu.CompilerParams(
            dimension_semantics=("parallel",)),
    )(obs_p, w1_p, b1_p, w2_p, b2_p, gumbel)

    sampled = sampled.reshape(b_pad)[:B]
    greedy = greedy.reshape(b_pad)[:B]
    return sampled, greedy


def categorical_policy_forward(obs, params, key=None, sample=True):
    """Equivalent of CategoricalPolicy.forward(obs, sample). Returns int32 [B]."""
    if key is None:
        key = jax.random.PRNGKey(0)
    sampled, greedy = categorical_policy_sample_and_greedy(obs, params, key)
    return sampled if sample else greedy


def make_params(key, obs_dim, hidden, n_actions):
    k1, k2 = jax.random.split(key, 2)
    w1 = 0.1 * jax.random.normal(k1, (obs_dim, hidden), jnp.float32)
    b1 = jnp.zeros((1, hidden), jnp.float32)
    w2 = 0.1 * jax.random.normal(k2, (hidden, n_actions), jnp.float32)
    b2 = jnp.zeros((1, n_actions), jnp.float32)
    return w1, b1, w2, b2


if __name__ == "__main__":
    key = jax.random.PRNGKey(0)
    k_obs, k_params, k_sample = jax.random.split(key, 3)

    B, D, H, A = 8, 32, 32, 8          # batch, obs_dim, hidden, n_actions
    obs = jax.random.normal(k_obs, (B, D), jnp.float32)
    params = make_params(k_params, D, H, A)

    # Single fused pallas_call produces both forward paths of the module.
    sampled, greedy = categorical_policy_sample_and_greedy(obs, params, k_sample)
    jax.block_until_ready((sampled, greedy))

    # Pure-JAX greedy reference (same bf16-operand / f32-accum math as kernel).
    w1, b1, w2, b2 = params
    h_ref = jnp.maximum(
        jnp.dot(obs.astype(jnp.bfloat16), w1.astype(jnp.bfloat16),
                preferred_element_type=jnp.float32) + b1, 0.0)
    logits_ref = jnp.dot(h_ref.astype(jnp.bfloat16), w2.astype(jnp.bfloat16),
                         preferred_element_type=jnp.float32) + b2
    greedy_ref = jnp.argmax(logits_ref, axis=-1).astype(jnp.int32)

    assert sampled.shape == (B,) and greedy.shape == (B,)
    assert bool(jnp.all((sampled >= 0) & (sampled < A)))
    assert bool(jnp.all((greedy >= 0) & (greedy < A)))
    assert bool(jnp.all(greedy == greedy_ref))
    print("KERNEL_OK")
</pallas_src>

<mosaic_0001>
module attributes {stable_mosaic.version = 11 : i64} {
  func.func @_policy_kernel(%arg0: i32, %arg1: memref<128x128xf32, #tpu.memory_space<vmem>>, %arg2: memref<128x128xbf16, #tpu.memory_space<vmem>>, %arg3: memref<1x128xf32, #tpu.memory_space<vmem>>, %arg4: memref<128x128xbf16, #tpu.memory_space<vmem>>, %arg5: memref<1x128xf32, #tpu.memory_space<vmem>>, %arg6: memref<128x128xf32, #tpu.memory_space<vmem>>, %arg7: memref<1x1x128xi32, #tpu.memory_space<vmem>>, %arg8: memref<1x1x128xi32, #tpu.memory_space<vmem>>) attributes {dimension_semantics = [#tpu.dimension_semantics<parallel>], iteration_bounds = array<i64: 1>, scalar_prefetch = 0 : i64, scratch_operands = 0 : i64, tpu.core_type = #tpu.core_type<tc>, window_params = [{transform_indices = @transform_0, window_bounds = array<i64: 128, 128>}, {pipeline_mode = #tpu.pipeline_mode<synchronous>, transform_indices = @transform_1, window_bounds = array<i64: 128, 128>}, {pipeline_mode = #tpu.pipeline_mode<synchronous>, transform_indices = @transform_2, window_bounds = array<i64: 1, 128>}, {pipeline_mode = #tpu.pipeline_mode<synchronous>, transform_indices = @transform_3, window_bounds = array<i64: 128, 128>}, {pipeline_mode = #tpu.pipeline_mode<synchronous>, transform_indices = @transform_4, window_bounds = array<i64: 1, 128>}, {transform_indices = @transform_5, window_bounds = array<i64: 128, 128>}, {transform_indices = @transform_6, window_bounds = array<i64: 1, 1, 128>}, {transform_indices = @transform_7, window_bounds = array<i64: 1, 1, 128>}]} {
    %c0 = arith.constant 0 : index
    %c0_0 = arith.constant 0 : index
    %0 = vector.load %arg1[%c0, %c0_0] : memref<128x128xf32, #tpu.memory_space<vmem>>, vector<128x128xf32>
    %1 = arith.truncf %0 : vector<128x128xf32> to vector<128x128xbf16>
    %c0_1 = arith.constant 0 : index
    %c0_2 = arith.constant 0 : index
    %2 = vector.load %arg2[%c0_1, %c0_2] : memref<128x128xbf16, #tpu.memory_space<vmem>>, vector<128x128xbf16>
    %cst = arith.constant dense<0.000000e+00> : vector<128x128xf32>
    %3 = tpu.matmul %1, %2, %cst {dimension_numbers = #tpu.dot_dimension_numbers<[1], [0], [0], [1], [0, 0, 1, 1], [], []>} : vector<128x128xbf16>, vector<128x128xbf16>, vector<128x128xf32> -> vector<128x128xf32>
    %c0_3 = arith.constant 0 : index
    %c0_4 = arith.constant 0 : index
    %4 = vector.load %arg3[%c0_3, %c0_4] : memref<1x128xf32, #tpu.memory_space<vmem>>, vector<1x128xf32>
    %5 = vector.broadcast %4 : vector<1x128xf32> to vector<128x128xf32>
    %6 = arith.addf %3, %5 : vector<128x128xf32>
    %cst_5 = arith.constant 0.000000e+00 : f32
    %7 = vector.broadcast %cst_5 : f32 to vector<128x128xf32>
    %8 = arith.maximumf %6, %7 : vector<128x128xf32>
    %9 = arith.truncf %8 : vector<128x128xf32> to vector<128x128xbf16>
    %c0_6 = arith.constant 0 : index
    %c0_7 = arith.constant 0 : index
    %10 = vector.load %arg4[%c0_6, %c0_7] : memref<128x128xbf16, #tpu.memory_space<vmem>>, vector<128x128xbf16>
    %cst_8 = arith.constant dense<0.000000e+00> : vector<128x128xf32>
    %11 = tpu.matmul %9, %10, %cst_8 {dimension_numbers = #tpu.dot_dimension_numbers<[1], [0], [0], [1], [0, 0, 1, 1], [], []>} : vector<128x128xbf16>, vector<128x128xbf16>, vector<128x128xf32> -> vector<128x128xf32>
    %c0_9 = arith.constant 0 : index
    %c0_10 = arith.constant 0 : index
    %12 = vector.load %arg5[%c0_9, %c0_10] : memref<1x128xf32, #tpu.memory_space<vmem>>, vector<1x128xf32>
    %13 = vector.broadcast %12 : vector<1x128xf32> to vector<128x128xf32>
    %14 = arith.addf %11, %13 : vector<128x128xf32>
    %15 = tpu.transpose %14, [1, 0] : vector<128x128xf32> -> vector<128x128xf32>
    %16 = tpu.iota {dimensions = array<i32: 0>} : vector<128x128xi32>
    %c8_i32 = arith.constant 8 : i32
    %17 = vector.broadcast %c8_i32 : i32 to vector<128x128xi32>
    %18 = arith.cmpi slt, %16, %17 : vector<128x128xi32>
    %cst_11 = arith.constant -1.000000e+30 : f32
    %19 = vector.broadcast %cst_11 : f32 to vector<128x128xf32>
    %20 = arith.select %18, %15, %19 : vector<128x128xi1>, vector<128x128xf32>
    %cst_12 = arith.constant dense<0xFF800000> : vector<128xf32>
    %21 = vector.multi_reduction <maximumf>, %20, %cst_12 [0] : vector<128x128xf32> to vector<128xf32>
    %22 = vector.shape_cast %21 : vector<128xf32> to vector<1x128xf32>
    %23 = vector.broadcast %22 : vector<1x128xf32> to vector<128x128xf32>
    %24 = arith.cmpf oeq, %20, %23 : vector<128x128xf32>
    %c128_i32 = arith.constant 128 : i32
    %25 = vector.broadcast %c128_i32 : i32 to vector<128x128xi32>
    %26 = arith.select %24, %16, %25 : vector<128x128xi1>, vector<128x128xi32>
    %cst_13 = arith.constant dense<2147483647> : vector<128xi32>
    %27 = vector.multi_reduction <minsi>, %26, %cst_13 [0] : vector<128x128xi32> to vector<128xi32>
    %28 = vector.shape_cast %27 : vector<128xi32> to vector<1x128xi32>
    %c7_i32 = arith.constant 7 : i32
    %29 = vector.broadcast %c7_i32 : i32 to vector<1x128xi32>
    %30 = arith.minsi %28, %29 : vector<1x128xi32>
    %c0_14 = arith.constant 0 : index
    %c0_15 = arith.constant 0 : index
    %c0_16 = arith.constant 0 : index
    %31 = vector.load %arg8[%c0_14, %c0_15, %c0_16] : memref<1x1x128xi32, #tpu.memory_space<vmem>>, vector<1x1x128xi32>
    %32 = vector.shape_cast %31 : vector<1x1x128xi32> to vector<1x128xi32>
    %33 = vector.shape_cast %30 : vector<1x128xi32> to vector<1x1x128xi32>
    tpu.vector_store %arg8[%c0_14, %c0_15, %c0_16], %33 {strides = array<i32>} : memref<1x1x128xi32, #tpu.memory_space<vmem>>, vector<1x1x128xi32>,
    %c0_17 = arith.constant 0 : index
    %c0_18 = arith.constant 0 : index
    %34 = vector.load %arg6[%c0_17, %c0_18] : memref<128x128xf32, #tpu.memory_space<vmem>>, vector<128x128xf32>
    %35 = arith.addf %20, %34 : vector<128x128xf32>
    %cst_19 = arith.constant dense<0xFF800000> : vector<128xf32>
    %36 = vector.multi_reduction <maximumf>, %35, %cst_19 [0] : vector<128x128xf32> to vector<128xf32>
    %37 = vector.shape_cast %36 : vector<128xf32> to vector<1x128xf32>
    %38 = vector.broadcast %37 : vector<1x128xf32> to vector<128x128xf32>
    %39 = arith.cmpf oeq, %35, %38 : vector<128x128xf32>
    %c128_i32_20 = arith.constant 128 : i32
    %40 = vector.broadcast %c128_i32_20 : i32 to vector<128x128xi32>
    %41 = arith.select %39, %16, %40 : vector<128x128xi1>, vector<128x128xi32>
    %cst_21 = arith.constant dense<2147483647> : vector<128xi32>
    %42 = vector.multi_reduction <minsi>, %41, %cst_21 [0] : vector<128x128xi32> to vector<128xi32>
    %43 = vector.shape_cast %42 : vector<128xi32> to vector<1x128xi32>
    %c7_i32_22 = arith.constant 7 : i32
    %44 = vector.broadcast %c7_i32_22 : i32 to vector<1x128xi32>
    %45 = arith.minsi %43, %44 : vector<1x128xi32>
    %c0_23 = arith.constant 0 : index
    %c0_24 = arith.constant 0 : index
    %c0_25 = arith.constant 0 : index
    %46 = vector.load %arg7[%c0_23, %c0_24, %c0_25] : memref<1x1x128xi32, #tpu.memory_space<vmem>>, vector<1x1x128xi32>
    %47 = vector.shape_cast %46 : vector<1x1x128xi32> to vector<1x128xi32>
    %48 = vector.shape_cast %45 : vector<1x128xi32> to vector<1x1x128xi32>
    tpu.vector_store %arg7[%c0_23, %c0_24, %c0_25], %48 {strides = array<i32>} : memref<1x1x128xi32, #tpu.memory_space<vmem>>, vector<1x1x128xi32>,
    return
  }
  func.func @transform_0(%arg0: i32) -> (i32, i32) {
    %c0_i32 = arith.constant 0 : i32
    %c0_i32_0 = arith.constant 0 : i32
    return %arg0, %c0_i32 : i32, i32
  }
  func.func @transform_1(%arg0: i32) -> (i32, i32) {
    %c0_i32 = arith.constant 0 : i32
    %c0_i32_0 = arith.constant 0 : i32
    %c0_i32_1 = arith.constant 0 : i32
    return %c0_i32, %c0_i32_0 : i32, i32
  }
  func.func @transform_2(%arg0: i32) -> (i32, i32) {
    %c0_i32 = arith.constant 0 : i32
    %c0_i32_0 = arith.constant 0 : i32
    %c0_i32_1 = arith.constant 0 : i32
    return %c0_i32, %c0_i32_0 : i32, i32
  }
  func.func @transform_3(%arg0: i32) -> (i32, i32) {
    %c0_i32 = arith.constant 0 : i32
    %c0_i32_0 = arith.constant 0 : i32
    %c0_i32_1 = arith.constant 0 : i32
    return %c0_i32, %c0_i32_0 : i32, i32
  }
  func.func @transform_4(%arg0: i32) -> (i32, i32) {
    %c0_i32 = arith.constant 0 : i32
    %c0_i32_0 = arith.constant 0 : i32
    %c0_i32_1 = arith.constant 0 : i32
    return %c0_i32, %c0_i32_0 : i32, i32
  }
  func.func @transform_5(%arg0: i32) -> (i32, i32) {
    %c0_i32 = arith.constant 0 : i32
    %c0_i32_0 = arith.constant 0 : i32
    return %c0_i32, %arg0 : i32, i32
  }
  func.func @transform_6(%arg0: i32) -> (i32, i32, i32) {
    %c0_i32 = arith.constant 0 : i32
    %c0_i32_0 = arith.constant 0 : i32
    %c0_i32_1 = arith.constant 0 : i32
    return %arg0, %c0_i32, %c0_i32_0 : i32, i32, i32
  }
  func.func @transform_7(%arg0: i32) -> (i32, i32, i32) {
    %c0_i32 = arith.constant 0 : i32
    %c0_i32_0 = arith.constant 0 : i32
    %c0_i32_1 = arith.constant 0 : i32
    return %arg0, %c0_i32, %c0_i32_0 : i32, i32, i32
  }
}

</mosaic_0001>

<llo_original>
// kernel: tpu_custom_call.1
$region0: #{tpu_custom_call.1}
  #allocation0 [shape = 'u32[]', space=smem, size = 0x4, offset = 0x4, fixed_abs, tag = 'smem constant byte address 0x4 - core index']
  #allocation1 [shape = 'u32[144,128]{1,0:T(1,128)}', space=vmem, size = 0x12000, scoped, tag = 'internal scratch']
  %s0 = inlined_call_operand.hbm [shape: f32[128,128], index: 0, kind: input, shape index: {}]
  %s1 = inlined_call_operand.hbm [shape: bf16[128,128], index: 1, kind: input, shape index: {}]
  %s2 = inlined_call_operand.vmem [shape: f32[1,128], index: 2, kind: input, shape index: {}]
  %s3 = inlined_call_operand.hbm [shape: bf16[128,128], index: 3, kind: input, shape index: {}]
  %s4 = inlined_call_operand.vmem [shape: f32[1,128], index: 4, kind: input, shape index: {}]
  %s5 = inlined_call_operand.hbm [shape: f32[128,128], index: 5, kind: input, shape index: {}]
  %s6 = inlined_call_operand.hbm [shape: s32[1,1,128], index: 6, kind: output, shape index: {0}]
  %s7 = inlined_call_operand.hbm [shape: s32[1,1,128], index: 7, kind: output, shape index: {1}]
  %8 = xla_tuple %s6, %s7
  %s9 = sld [smem:[#allocation0]]
  $region58: #{tpu_custom_call.1} parent=0
    _
  %s11 = ssub.s32 1, %s9
  %s12 = scalar_select 0, %s11, %s9
  $region1: #{tpu_custom_call.1} parent=0
    #allocation2 [shape = 'u8[65536]{0}', space=vmem, size = 0x10000, scoped, tag = 'input window, operand 0, single buffered']
    #allocation3 [shape = 's32[1]{0}', space=sflag, size = 0x4, scoped, tag = 'scoped memory for tpu_custom_call.1']
    #allocation4 [shape = 's32[1]{0}', space=sflag, size = 0x4, scoped, tag = 'scoped memory for tpu_custom_call.1']
    #allocation5 [shape = 'u8[32768]{0}', space=vmem, size = 0x8000, scoped, tag = 'input window, operand 1, single buffered']
    #allocation6 [shape = 's32[1]{0}', space=sflag, size = 0x4, scoped, tag = 'scoped memory for tpu_custom_call.1']
    #allocation7 [shape = 'u8[32768]{0}', space=vmem, size = 0x8000, scoped, tag = 'input window, operand 3, single buffered']
    #allocation8 [shape = 'u8[65536]{0}', space=vmem, size = 0x10000, scoped, tag = 'input window, operand 5, single buffered']
    #allocation9 [shape = 's32[1]{0}', space=sflag, size = 0x4, scoped, tag = 'scoped memory for tpu_custom_call.1']
    #allocation10 [shape = 'u8[512]{0}', space=vmem, size = 0x400, scoped, tag = 'output window, operand 0, single buffered']
    #allocation11 [shape = 'u8[512]{0}', space=vmem, size = 0x400, scoped, tag = 'output window, operand 1, single buffered']
    #allocation12 [shape = 's32[1]{0}', space=sflag, size = 0x4, scoped, tag = 'scoped memory for tpu_custom_call.1']
    %13 = vsyncpa [#allocation3], 0
    %14 = vsyncpa [#allocation6], 0
    %15 = vsyncpa [#allocation9], 0
    %16 = vsyncpa [#allocation4], 0
    %17 = vsyncpa [#allocation12], 0
    // Predicated region
    $region2: #{tpu_custom_call.1} parent=1 // pred_check
      _
    $region3: #{tpu_custom_call.1} parent=1 // pred_check_branch
      %19 = sbr.rel (0) target = $region5
    $region4: #{tpu_custom_call.1} parent=1 // pred_region
      %s21 = ssub.s32 2048, 2048
      %22 = vsyncadd [#allocation3], %s21
      %s23 = sshll.u32 [#allocation2], 4
      %s24 = int_to_ptr.vmem [resolvable:$true] %s23
      %29 = dma.hbm_to_vmem [thread:$0]  %s0, 2048, %s24, [#allocation3], 128, 128, 8
    $region5: #{tpu_custom_call.1} parent=1 // pred_fallthru
      _
    // Predicated region
    $region6: #{tpu_custom_call.1} parent=1 // pred_check
      _
    $region7: #{tpu_custom_call.1} parent=1 // pred_check_branch
      %31 = sbr.rel (0) target = $region9
    $region8: #{tpu_custom_call.1} parent=1 // pred_region
      %s33 = ssub.s32 1024, 1024
      %34 = vsyncadd [#allocation6], %s33
      %s35 = sshll.u32 [#allocation5], 4
      %s36 = int_to_ptr.vmem [resolvable:$true] %s35
      %41 = dma.hbm_to_vmem [thread:$0]  %s1, 1024, %s36, [#allocation6], 64, 64, 4
    $region9: #{tpu_custom_call.1} parent=1 // pred_fallthru
      _
    // Predicated region
    $region10: #{tpu_custom_call.1} parent=1 // pred_check
      _
    $region11: #{tpu_custom_call.1} parent=1 // pred_check_branch
      %43 = sbr.rel (0) target = $region13
    $region12: #{tpu_custom_call.1} parent=1 // pred_region
      _
    $region13: #{tpu_custom_call.1} parent=1 // pred_fallthru
      _
    // Predicated region
    $region14: #{tpu_custom_call.1} parent=1 // pred_check
      _
    $region15: #{tpu_custom_call.1} parent=1 // pred_check_branch
      %45 = sbr.rel (0) target = $region17
    $region16: #{tpu_custom_call.1} parent=1 // pred_region
      %s47 = ssub.s32 1024, 1024
      %48 = vsyncadd [#allocation6], %s47
      %s49 = sshll.u32 [#allocation7], 4
      %s50 = int_to_ptr.vmem [resolvable:$true] %s49
      %55 = dma.hbm_to_vmem [thread:$0]  %s3, 1024, %s50, [#allocation6], 64, 64, 4
    $region17: #{tpu_custom_call.1} parent=1 // pred_fallthru
      _
    // Predicated region
    $region18: #{tpu_custom_call.1} parent=1 // pred_check
      _
    $region19: #{tpu_custom_call.1} parent=1 // pred_check_branch
      %57 = sbr.rel (0) target = $region21
    $region20: #{tpu_custom_call.1} parent=1 // pred_region
      _
    $region21: #{tpu_custom_call.1} parent=1 // pred_fallthru
      _
    // Predicated region
    $region22: #{tpu_custom_call.1} parent=1 // pred_check
      _
    $region23: #{tpu_custom_call.1} parent=1 // pred_check_branch
      %59 = sbr.rel (0) target = $region25
    $region24: #{tpu_custom_call.1} parent=1 // pred_region
      %s61 = ssub.s32 2048, 2048
      %62 = vsyncadd [#allocation9], %s61
      %s63 = sshll.u32 [#allocation8], 4
      %s64 = int_to_ptr.vmem [resolvable:$true] %s63
      %69 = dma.hbm_to_vmem [thread:$0]  %s5, 2048, %s64, [#allocation9], 128, 128, 8
    $region25: #{tpu_custom_call.1} parent=1 // pred_fallthru
      _
    // Predicated region
    $region26: #{tpu_custom_call.1} parent=1 // pred_check
      _
    $region27: #{tpu_custom_call.1} parent=1 // pred_check_branch
      %71 = sbr.rel (0) target = $region29
    $region28: #{tpu_custom_call.1} parent=1 // pred_region
      %72 = dma.done [#allocation3], 2048
    $region29: #{tpu_custom_call.1} parent=1 // pred_fallthru
      _
    // Predicated region
    $region30: #{tpu_custom_call.1} parent=1 // pred_check
      _
    $region31: #{tpu_custom_call.1} parent=1 // pred_check_branch
      %74 = sbr.rel (0) target = $region33
    $region32: #{tpu_custom_call.1} parent=1 // pred_region
      %75 = dma.done [#allocation6], 1024
    $region33: #{tpu_custom_call.1} parent=1 // pred_fallthru
      _
    // Predicated region
    $region34: #{tpu_custom_call.1} parent=1 // pred_check
      _
    $region35: #{tpu_custom_call.1} parent=1 // pred_check_branch
      %77 = sbr.rel (0) target = $region37
    $region36: #{tpu_custom_call.1} parent=1 // pred_region
      %78 = dma.done [#allocation6], 1024
    $region37: #{tpu_custom_call.1} parent=1 // pred_fallthru
      _
    // Predicated region
    $region38: #{tpu_custom_call.1} parent=1 // pred_check
      _
    $region39: #{tpu_custom_call.1} parent=1 // pred_check_branch
      %80 = sbr.rel (0) target = $region41
    $region40: #{tpu_custom_call.1} parent=1 // pred_region
      %81 = dma.done [#allocation9], 2048
    $region41: #{tpu_custom_call.1} parent=1 // pred_fallthru
      _
    %v83 = vld [vmem:[#allocation2] sm:$0xff]
    %v84 = vld [vmem:[#allocation2 + $0x8] sm:$0xff]
    %v85 = vld [vmem:[#allocation2 + $0x10] sm:$0xff]
    %v86 = vld [vmem:[#allocation2 + $0x18] sm:$0xff]
    %v87 = vld [vmem:[#allocation2 + $0x20] sm:$0xff]
    %v88 = vld [vmem:[#allocation2 + $0x28] sm:$0xff]
    %v89 = vld [vmem:[#allocation2 + $0x30] sm:$0xff]
    %v90 = vld [vmem:[#allocation2 + $0x38] sm:$0xff]
    %v91 = vld [vmem:[#allocation2 + $0x40] sm:$0xff]
    %v92 = vld [vmem:[#allocation2 + $0x48] sm:$0xff]
    %v93 = vld [vmem:[#allocation2 + $0x50] sm:$0xff]
    %v94 = vld [vmem:[#allocation2 + $0x58] sm:$0xff]
    %v95 = vld [vmem:[#allocation2 + $0x60] sm:$0xff]
    %v96 = vld [vmem:[#allocation2 + $0x68] sm:$0xff]
    %v97 = vld [vmem:[#allocation2 + $0x70] sm:$0xff]
    %v98 = vld [vmem:[#allocation2 + $0x78] sm:$0xff]
    %v99 = vpack.c.bf16 %v84, %v83
    %v100 = vpack.c.bf16 %v86, %v85
    %v101 = vpack.c.bf16 %v88, %v87
    %v102 = vpack.c.bf16 %v90, %v89
    %v103 = vpack.c.bf16 %v92, %v91
    %v104 = vpack.c.bf16 %v94, %v93
    %v105 = vpack.c.bf16 %v96, %v95
    %v106 = vpack.c.bf16 %v98, %v97
    %v107 = vld [vmem:[#allocation5] sm:$0xf]
    %v108 = vld [vmem:[#allocation5 + $0x4] sm:$0xf]
    %v109 = vld [vmem:[#allocation5 + $0x8] sm:$0xf]
    %v110 = vld [vmem:[#allocation5 + $0xc] sm:$0xf]
    %v111 = vld [vmem:[#allocation5 + $0x10] sm:$0xf]
    %v112 = vld [vmem:[#allocation5 + $0x14] sm:$0xf]
    %v113 = vld [vmem:[#allocation5 + $0x18] sm:$0xf]
    %v114 = vld [vmem:[#allocation5 + $0x1c] sm:$0xf]
    %v115 = vld [vmem:[#allocation5 + $0x20] sm:$0xf]
    %v116 = vld [vmem:[#allocation5 + $0x24] sm:$0xf]
    %v117 = vld [vmem:[#allocation5 + $0x28] sm:$0xf]
    %v118 = vld [vmem:[#allocation5 + $0x2c] sm:$0xf]
    %v119 = vld [vmem:[#allocation5 + $0x30] sm:$0xf]
    %v120 = vld [vmem:[#allocation5 + $0x34] sm:$0xf]
    %v121 = vld [vmem:[#allocation5 + $0x38] sm:$0xf]
    %v122 = vld [vmem:[#allocation5 + $0x3c] sm:$0xf]
    %v123 = vld [vmem:[%s2] sm:$0x1]
    %v125 = vlaneseq
    %v126 = vshrl.u32 %v125, 7
    %v127 = vsub.s32 0, %v126
    %v128 = vrot.slane %v123, %v127
    %v146 = vunpack.c.l.b16 %v107
    %v147 = vunpack.c.l.b16 %v108
    %v148 = vunpack.c.l.b16 %v109
    %v149 = vunpack.c.l.b16 %v110
    %v150 = vunpack.c.l.b16 %v111
    %v151 = vunpack.c.l.b16 %v112
    %v152 = vunpack.c.l.b16 %v113
    %v153 = vunpack.c.l.b16 %v114
    %v154 = vunpack.c.l.b16 %v115
    %v155 = vunpack.c.l.b16 %v116
    %v156 = vunpack.c.l.b16 %v117
    %v157 = vunpack.c.l.b16 %v118
    %v158 = vunpack.c.l.b16 %v119
    %v159 = vunpack.c.l.b16 %v120
    %v160 = vunpack.c.l.b16 %v121
    %v161 = vunpack.c.l.b16 %v122
    %v162 = vpack.c.b16 %v147, %v146
    %v163 = vpack.c.b16 %v149, %v148
    %v164 = vpack.c.b16 %v151, %v150
    %v165 = vpack.c.b16 %v153, %v152
    %v166 = vpack.c.b16 %v155, %v154
    %v167 = vpack.c.b16 %v157, %v156
    %v168 = vpack.c.b16 %v159, %v158
    %v169 = vpack.c.b16 %v161, %v160
    %178 = vmatprep.subr.bf16.mxu0 0
    %179 = vmatpush1.bf16.msra.mxu0 %v162
    %180 = vmatprep.subr.bf16.mxu0 0
    %181 = vmatpush1.bf16.msra.mxu0 %v163
    %182 = vmatprep.subr.bf16.mxu0 0
    %183 = vmatpush1.bf16.msra.mxu0 %v164
    %184 = vmatprep.subr.bf16.mxu0 0
    %185 = vmatpush1.bf16.msra.mxu0 %v165
    %186 = vmatprep.subr.bf16.mxu0 0
    %187 = vmatpush1.bf16.msra.mxu0 %v166
    %188 = vmatprep.subr.bf16.mxu0 0
    %189 = vmatpush1.bf16.msra.mxu0 %v167
    %190 = vmatprep.subr.bf16.mxu0 0
    %191 = vmatpush1.bf16.msra.mxu0 %v168
    %192 = vmatprep.subr.bf16.mxu0 0
    %193 = vmatpush1.bf16.msra.mxu0 %v169
    %194 = vmatprep.subr.bf16.mxu0 0
    %195 = vmatpush1.bf16.msra.mxu0 0
    %196 = vmatprep.subr.bf16.mxu0 0
    %197 = vmatpush1.bf16.msra.mxu0 0
    %198 = vmatprep.subr.bf16.mxu0 0
    %199 = vmatpush1.bf16.msra.mxu0 0
    %200 = vmatprep.subr.bf16.mxu0 0
    %201 = vmatpush1.bf16.msra.mxu0 0
    %202 = vmatprep.subr.bf16.mxu0 0
    %203 = vmatpush1.bf16.msra.mxu0 0
    %204 = vmatprep.subr.bf16.mxu0 0
    %205 = vmatpush1.bf16.msra.mxu0 0
    %206 = vmatprep.subr.bf16.mxu0 0
    %207 = vmatpush1.bf16.msra.mxu0 0
    %208 = vmatprep.subr.bf16.mxu0 0
    %209 = vmatpush1.bf16.msra.mxu0 0
    %210 = vmatprep.mubr.bf16.mxu0 0
    %211 = vmatmul.mubr.bf16.gmra.mrb[0].mxu0 %v99
    %v212 = vpop.f32.mrb[0].mxu0
    %v213 = vadd.f32 %v128, %v212
    %v214 = vpop.f32.mrb[0].mxu0
    %v215 = vpop.f32.mrb[0].mxu0
    %v216 = vadd.f32 %v128, %v215
    %v217 = vpop.f32.mrb[0].mxu0
    %218 = vmatprep.mubr.bf16.mxu0 0
    %219 = vmatmul.mubr.bf16.gmra.mrb[0].mxu0 %v100
    %v220 = vpop.f32.mrb[0].mxu0
    %v221 = vadd.f32 %v128, %v220
    %v222 = vpop.f32.mrb[0].mxu0
    %v223 = vpop.f32.mrb[0].mxu0
    %v224 = vadd.f32 %v128, %v223
    %v225 = vpop.f32.mrb[0].mxu0
    %226 = vmatprep.mubr.bf16.mxu0 0
    %227 = vmatmul.mubr.bf16.gmra.mrb[0].mxu0 %v101
    %v228 = vpop.f32.mrb[0].mxu0
    %v229 = vadd.f32 %v128, %v228
    %v230 = vpop.f32.mrb[0].mxu0
    %v231 = vpop.f32.mrb[0].mxu0
    %v232 = vadd.f32 %v128, %v231
    %v233 = vpop.f32.mrb[0].mxu0
    %234 = vmatprep.mubr.bf16.mxu0 0
    %235 = vmatmul.mubr.bf16.gmra.mrb[0].mxu0 %v102
    %v236 = vpop.f32.mrb[0].mxu0
    %v237 = vadd.f32 %v128, %v236
    %v238 = vpop.f32.mrb[0].mxu0
    %v239 = vpop.f32.mrb[0].mxu0
    %v240 = vadd.f32 %v128, %v239
    %v241 = vpop.f32.mrb[0].mxu0
    %242 = vmatprep.mubr.bf16.mxu0 0
    %243 = vmatmul.mubr.bf16.gmra.mrb[0].mxu0 %v103
    %v244 = vpop.f32.mrb[0].mxu0
    %v245 = vadd.f32 %v128, %v244
    %v246 = vpop.f32.mrb[0].mxu0
    %v247 = vpop.f32.mrb[0].mxu0
    %v248 = vadd.f32 %v128, %v247
    %v249 = vpop.f32.mrb[0].mxu0
    %250 = vmatprep.mubr.bf16.mxu0 0
    %251 = vmatmul.mubr.bf16.gmra.mrb[0].mxu0 %v104
    %v252 = vpop.f32.mrb[0].mxu0
    %v253 = vadd.f32 %v128, %v252
    %v254 = vpop.f32.mrb[0].mxu0
    %v255 = vpop.f32.mrb[0].mxu0
    %v256 = vadd.f32 %v128, %v255
    %v257 = vpop.f32.mrb[0].mxu0
    %258 = vmatprep.mubr.bf16.mxu0 0
    %259 = vmatmul.mubr.bf16.gmra.mrb[0].mxu0 %v105
    %v260 = vpop.f32.mrb[0].mxu0
    %v261 = vadd.f32 %v128, %v260
    %v262 = vpop.f32.mrb[0].mxu0
    %v263 = vpop.f32.mrb[0].mxu0
    %v264 = vadd.f32 %v128, %v263
    %v265 = vpop.f32.mrb[0].mxu0
    %266 = vmatprep.mubr.bf16.mxu0 0
    %267 = vmatmul.mubr.bf16.gmra.mrb[0].mxu0 %v106
    %v268 = vpop.f32.mrb[0].mxu0
    %v269 = vadd.f32 %v128, %v268
    %v270 = vpop.f32.mrb[0].mxu0
    %v271 = vpop.f32.mrb[0].mxu0
    %v272 = vadd.f32 %v128, %v271
    %v273 = vpop.f32.mrb[0].mxu0
    %274 = vdwg.mxu0
    %v275 = vmax.f32 %v213, 0.0
    %v276 = vmax.f32 %v216, 0.0
    %v277 = vmax.f32 %v221, 0.0
    %v278 = vmax.f32 %v224, 0.0
    %v279 = vmax.f32 %v229, 0.0
    %v280 = vmax.f32 %v232, 0.0
    %v281 = vmax.f32 %v237, 0.0
    %v282 = vmax.f32 %v240, 0.0
    %v283 = vmax.f32 %v245, 0.0
    %v284 = vmax.f32 %v248, 0.0
    %v285 = vmax.f32 %v253, 0.0
    %v286 = vmax.f32 %v256, 0.0
    %v287 = vmax.f32 %v261, 0.0
    %v288 = vmax.f32 %v264, 0.0
    %v289 = vmax.f32 %v269, 0.0
    %v290 = vmax.f32 %v272, 0.0
    %v291 = vpack.c.bf16 %v276, %v275
    %v292 = vpack.c.bf16 %v278, %v277
    %v293 = vpack.c.bf16 %v280, %v279
    %v294 = vpack.c.bf16 %v282, %v281
    %v295 = vpack.c.bf16 %v284, %v283
    %v296 = vpack.c.bf16 %v286, %v285
    %v297 = vpack.c.bf16 %v288, %v287
    %v298 = vpack.c.bf16 %v290, %v289
    %v299 = vld [vmem:[#allocation7] sm:$0xf]
    %v300 = vld [vmem:[#allocation7 + $0x4] sm:$0xf]
    %v301 = vld [vmem:[#allocation7 + $0x8] sm:$0xf]
    %v302 = vld [vmem:[#allocation7 + $0xc] sm:$0xf]
    %v303 = vld [vmem:[#allocation7 + $0x10] sm:$0xf]
    %v304 = vld [vmem:[#allocation7 + $0x14] sm:$0xf]
    %v305 = vld [vmem:[#allocation7 + $0x18] sm:$0xf]
    %v306 = vld [vmem:[#allocation7 + $0x1c] sm:$0xf]
    %v307 = vld [vmem:[#allocation7 + $0x20] sm:$0xf]
    %v308 = vld [vmem:[#allocation7 + $0x24] sm:$0xf]
    %v309 = vld [vmem:[#allocation7 + $0x28] sm:$0xf]
    %v310 = vld [vmem:[#allocation7 + $0x2c] sm:$0xf]
    %v311 = vld [vmem:[#allocation7 + $0x30] sm:$0xf]
    %v312 = vld [vmem:[#allocation7 + $0x34] sm:$0xf]
    %v313 = vld [vmem:[#allocation7 + $0x38] sm:$0xf]
    %v314 = vld [vmem:[#allocation7 + $0x3c] sm:$0xf]
    %v315 = vld [vmem:[%s4] sm:$0x1]
    %v317 = vlaneseq
    %v318 = vshrl.u32 %v317, 7
    %v319 = vsub.s32 0, %v318
    %v320 = vrot.slane %v315, %v319
    %v338 = vunpack.c.l.b16 %v299
    %v339 = vunpack.c.l.b16 %v300
    %v340 = vunpack.c.l.b16 %v301
    %v341 = vunpack.c.l.b16 %v302
    %v342 = vunpack.c.l.b16 %v303
    %v343 = vunpack.c.l.b16 %v304
    %v344 = vunpack.c.l.b16 %v305
    %v345 = vunpack.c.l.b16 %v306
    %v346 = vunpack.c.l.b16 %v307
    %v347 = vunpack.c.l.b16 %v308
    %v348 = vunpack.c.l.b16 %v309
    %v349 = vunpack.c.l.b16 %v310
    %v350 = vunpack.c.l.b16 %v311
    %v351 = vunpack.c.l.b16 %v312
    %v352 = vunpack.c.l.b16 %v313
    %v353 = vunpack.c.l.b16 %v314
    %v354 = vpack.c.b16 %v339, %v338
    %v355 = vpack.c.b16 %v341, %v340
    %v356 = vpack.c.b16 %v343, %v342
    %v357 = vpack.c.b16 %v345, %v344
    %v358 = vpack.c.b16 %v347, %v346
    %v359 = vpack.c.b16 %v349, %v348
    %v360 = vpack.c.b16 %v351, %v350
    %v361 = vpack.c.b16 %v353, %v352
    %370 = vmatprep.subr.bf16.mxu0 0
    %371 = vmatpush1.bf16.msra.mxu0 %v354
    %372 = vmatprep.subr.bf16.mxu0 0
    %373 = vmatpush1.bf16.msra.mxu0 %v355
    %374 = vmatprep.subr.bf16.mxu0 0
    %375 = vmatpush1.bf16.msra.mxu0 %v356
    %376 = vmatprep.subr.bf16.mxu0 0
    %377 = vmatpush1.bf16.msra.mxu0 %v357
    %378 = vmatprep.subr.bf16.mxu0 0
    %379 = vmatpush1.bf16.msra.mxu0 %v358
    %380 = vmatprep.subr.bf16.mxu0 0
    %381 = vmatpush1.bf16.msra.mxu0 %v359
    %382 = vmatprep.subr.bf16.mxu0 0
    %383 = vmatpush1.bf16.msra.mxu0 %v360
    %384 = vmatprep.subr.bf16.mxu0 0
    %385 = vmatpush1.bf16.msra.mxu0 %v361
    %386 = vmatprep.subr.bf16.mxu0 0
    %387 = vmatpush1.bf16.msra.mxu0 0
    %388 = vmatprep.subr.bf16.mxu0 0
    %389 = vmatpush1.bf16.msra.mxu0 0
    %390 = vmatprep.subr.bf16.mxu0 0
    %391 = vmatpush1.bf16.msra.mxu0 0
    %392 = vmatprep.subr.bf16.mxu0 0
    %393 = vmatpush1.bf16.msra.mxu0 0
    %394 = vmatprep.subr.bf16.mxu0 0
    %395 = vmatpush1.bf16.msra.mxu0 0
    %396 = vmatprep.subr.bf16.mxu0 0
    %397 = vmatpush1.bf16.msra.mxu0 0
    %398 = vmatprep.subr.bf16.mxu0 0
    %399 = vmatpush1.bf16.msra.mxu0 0
    %400 = vmatprep.subr.bf16.mxu0 0
    %401 = vmatpush1.bf16.msra.mxu0 0
    %402 = vmatprep.mubr.bf16.mxu0 0
    %403 = vmatmul.mubr.bf16.gmra.mrb[0].mxu0 %v291
    %v404 = vpop.f32.mrb[0].mxu0
    %v405 = vadd.f32 %v320, %v404
    %v406 = vpop.f32.mrb[0].mxu0
    %v407 = vpop.f32.mrb[0].mxu0
    %v408 = vadd.f32 %v320, %v407
    %v409 = vpop.f32.mrb[0].mxu0
    %410 = vmatprep.mubr.bf16.mxu0 0
    %411 = vmatmul.mubr.bf16.gmra.mrb[0].mxu0 %v292
    %v412 = vpop.f32.mrb[0].mxu0
    %v413 = vadd.f32 %v320, %v412
    %v414 = vpop.f32.mrb[0].mxu0
    %v415 = vpop.f32.mrb[0].mxu0
    %v416 = vadd.f32 %v320, %v415
    %v417 = vpop.f32.mrb[0].mxu0
    %418 = vmatprep.mubr.bf16.mxu0 0
    %419 = vmatmul.mubr.bf16.gmra.mrb[0].mxu0 %v293
    %v420 = vpop.f32.mrb[0].mxu0
    %v421 = vadd.f32 %v320, %v420
    %v422 = vpop.f32.mrb[0].mxu0
    %v423 = vpop.f32.mrb[0].mxu0
    %v424 = vadd.f32 %v320, %v423
    %v425 = vpop.f32.mrb[0].mxu0
    %426 = vmatprep.mubr.bf16.mxu0 0
    %427 = vmatmul.mubr.bf16.gmra.mrb[0].mxu0 %v294
    %v428 = vpop.f32.mrb[0].mxu0
    %v429 = vadd.f32 %v320, %v428
    %v430 = vpop.f32.mrb[0].mxu0
    %v431 = vpop.f32.mrb[0].mxu0
    %v432 = vadd.f32 %v320, %v431
    %v433 = vpop.f32.mrb[0].mxu0
    %434 = vmatprep.mubr.bf16.mxu0 0
    %435 = vmatmul.mubr.bf16.gmra.mrb[0].mxu0 %v295
    %v436 = vpop.f32.mrb[0].mxu0
    %v437 = vadd.f32 %v320, %v436
    %v438 = vpop.f32.mrb[0].mxu0
    %v439 = vpop.f32.mrb[0].mxu0
    %v440 = vadd.f32 %v320, %v439
    %v441 = vpop.f32.mrb[0].mxu0
    %442 = vmatprep.mubr.bf16.mxu0 0
    %443 = vmatmul.mubr.bf16.gmra.mrb[0].mxu0 %v296
    %v444 = vpop.f32.mrb[0].mxu0
    %v445 = vadd.f32 %v320, %v444
    %v446 = vpop.f32.mrb[0].mxu0
    %v447 = vpop.f32.mrb[0].mxu0
    %v448 = vadd.f32 %v320, %v447
    %v449 = vpop.f32.mrb[0].mxu0
    %450 = vmatprep.mubr.bf16.mxu0 0
    %451 = vmatmul.mubr.bf16.gmra.mrb[0].mxu0 %v297
    %v452 = vpop.f32.mrb[0].mxu0
    %v453 = vadd.f32 %v320, %v452
    %v454 = vpop.f32.mrb[0].mxu0
    %v455 = vpop.f32.mrb[0].mxu0
    %v456 = vadd.f32 %v320, %v455
    %v457 = vpop.f32.mrb[0].mxu0
    %458 = vmatprep.mubr.bf16.mxu0 0
    %459 = vmatmul.mubr.bf16.gmra.mrb[0].mxu0 %v298
    %v460 = vpop.f32.mrb[0].mxu0
    %v461 = vadd.f32 %v320, %v460
    %v462 = vpop.f32.mrb[0].mxu0
    %v463 = vpop.f32.mrb[0].mxu0
    %v464 = vadd.f32 %v320, %v463
    %v465 = vpop.f32.mrb[0].mxu0
    %466 = vdwg.mxu0
    %467 = vxpose.xlu0.b32.start [1/16] %v405, 128
    %468 = vxpose.xlu0.b32.cont [2/16] %v408, 128
    %469 = vxpose.xlu0.b32.cont [3/16] %v413, 128
    %470 = vxpose.xlu0.b32.cont [4/16] %v416, 128
    %471 = vxpose.xlu0.b32.cont [5/16] %v421, 128
    %472 = vxpose.xlu0.b32.cont [6/16] %v424, 128
    %473 = vxpose.xlu0.b32.cont [7/16] %v429, 128
    %474 = vxpose.xlu0.b32.cont [8/16] %v432, 128
    %475 = vxpose.xlu0.b32.cont [9/16] %v437, 128
    %476 = vxpose.xlu0.b32.cont [10/16] %v440, 128
    %477 = vxpose.xlu0.b32.cont [11/16] %v445, 128
    %478 = vxpose.xlu0.b32.cont [12/16] %v448, 128
    %479 = vxpose.xlu0.b32.cont [13/16] %v453, 128
    %480 = vxpose.xlu0.b32.cont [14/16] %v456, 128
    %481 = vxpose.xlu0.b32.cont [15/16] %v461, 128
    %482 = vxpose.xlu0.b32.end [16/16] %v464, 128
    %v483 = vpop.trf.xlu0
    %v484 = vpop.trf.xlu0
    %v485 = vpop.trf.xlu0
    %v486 = vpop.trf.xlu0
    %v487 = vpop.trf.xlu0
    %v488 = vpop.trf.xlu0
    %v489 = vpop.trf.xlu0
    %v490 = vpop.trf.xlu0
    %v491 = vpop.trf.xlu0
    %v492 = vpop.trf.xlu0
    %v493 = vpop.trf.xlu0
    %v494 = vpop.trf.xlu0
    %v495 = vpop.trf.xlu0
    %v496 = vpop.trf.xlu0
    %v497 = vpop.trf.xlu0
    %v498 = vpop.trf.xlu0
    %v499 = vlaneseq
    %v500 = vshrl.u32 %v499, 7
    %v501 = vadd.s32 %v500, 8
    %v502 = vadd.s32 %v500, 16
    %v503 = vadd.s32 %v500, 24
    %v504 = vadd.s32 %v500, 32
    %v505 = vadd.s32 %v500, 40
    %v506 = vadd.s32 %v500, 48
    %v507 = vadd.s32 %v500, 56
    %v508 = vadd.s32 %v500, 64
    %v509 = vadd.s32 %v500, 72
    %v510 = vadd.s32 %v500, 80
    %v511 = vadd.s32 %v500, 88
    %v512 = vadd.s32 %v500, 96
    %v513 = vadd.s32 %v500, 104
    %v514 = vadd.s32 %v500, 112
    %v515 = vadd.s32 %v500, 120
    %vm516 = vcmp.lt.s32.totalorder %v500, 8
    %vm517 = vcmp.lt.s32.totalorder %v501, 8
    %vm518 = vcmp.lt.s32.totalorder %v502, 8
    %vm519 = vcmp.lt.s32.totalorder %v503, 8
    %vm520 = vcmp.lt.s32.totalorder %v504, 8
    %vm521 = vcmp.lt.s32.totalorder %v505, 8
    %vm522 = vcmp.lt.s32.totalorder %v506, 8
    %vm523 = vcmp.lt.s32.totalorder %v507, 8
    %vm524 = vcmp.lt.s32.totalorder %v508, 8
    %vm525 = vcmp.lt.s32.totalorder %v509, 8
    %vm526 = vcmp.lt.s32.totalorder %v510, 8
    %vm527 = vcmp.lt.s32.totalorder %v511, 8
    %vm528 = vcmp.lt.s32.totalorder %v512, 8
    %vm529 = vcmp.lt.s32.totalorder %v513, 8
    %vm530 = vcmp.lt.s32.totalorder %v514, 8
    %vm531 = vcmp.lt.s32.totalorder %v515, 8
    %v532 = vsel %vm516, %v483, -1e+30
    %v533 = vsel %vm517, %v484, -1e+30
    %v534 = vsel %vm518, %v485, -1e+30
    %v535 = vsel %vm519, %v486, -1e+30
    %v536 = vsel %vm520, %v487, -1e+30
    %v537 = vsel %vm521, %v488, -1e+30
    %v538 = vsel %vm522, %v489, -1e+30
    %v539 = vsel %vm523, %v490, -1e+30
    %v540 = vsel %vm524, %v491, -1e+30
    %v541 = vsel %vm525, %v492, -1e+30
    %v542 = vsel %vm526, %v493, -1e+30
    %v543 = vsel %vm527, %v494, -1e+30
    %v544 = vsel %vm528, %v495, -1e+30
    %v545 = vsel %vm529, %v496, -1e+30
    %v546 = vsel %vm530, %v497, -1e+30
    %v547 = vsel %vm531, %v498, -1e+30
    %v548 = vmax.f32 %v532, %v536
    %v549 = vmax.f32 %v533, %v537
    %v550 = vmax.f32 %v534, %v538
    %v551 = vmax.f32 %v535, %v539
    %v552 = vmax.f32 %v548, %v540
    %v553 = vmax.f32 %v549, %v541
    %v554 = vmax.f32 %v550, %v542
    %v555 = vmax.f32 %v551, %v543
    %v556 = vmax.f32 %v552, %v544
    %v557 = vmax.f32 %v553, %v545
    %v558 = vmax.f32 %v554, %v546
    %v559 = vmax.f32 %v555, %v547
    %v560 = vmax.f32 %v556, %v557
    %v561 = vmax.f32 %v558, %v559
    %v562 = vmax.f32 %v560, %v561
    %v563 = vrot.slane %v562, 4
    %v564 = vmax.f32 %v562, %v563
    %v565 = vrot.slane %v564, 2
    %v566 = vmax.f32 %v564, %v565
    %v567 = vrot.slane %v566, 1
    %v568 = vmax.f32 %v566, %v567
    %vm569 = vcmp.eq.f32.partialorder %v532, %v568
    %vm570 = vcmp.eq.f32.partialorder %v533, %v568
    %vm571 = vcmp.eq.f32.partialorder %v534, %v568
    %vm572 = vcmp.eq.f32.partialorder %v535, %v568
    %vm573 = vcmp.eq.f32.partialorder %v536, %v568
    %vm574 = vcmp.eq.f32.partialorder %v537, %v568
    %vm575 = vcmp.eq.f32.partialorder %v538, %v568
    %vm576 = vcmp.eq.f32.partialorder %v539, %v568
    %vm577 = vcmp.eq.f32.partialorder %v540, %v568
    %vm578 = vcmp.eq.f32.partialorder %v541, %v568
    %vm579 = vcmp.eq.f32.partialorder %v542, %v568
    %vm580 = vcmp.eq.f32.partialorder %v543, %v568
    %vm581 = vcmp.eq.f32.partialorder %v544, %v568
    %vm582 = vcmp.eq.f32.partialorder %v545, %v568
    %vm583 = vcmp.eq.f32.partialorder %v546, %v568
    %vm584 = vcmp.eq.f32.partialorder %v547, %v568
    %v585 = vsel %vm569, %v500, 128
    %v586 = vsel %vm570, %v501, 128
    %v587 = vsel %vm571, %v502, 128
    %v588 = vsel %vm572, %v503, 128
    %v589 = vsel %vm573, %v504, 128
    %v590 = vsel %vm574, %v505, 128
    %v591 = vsel %vm575, %v506, 128
    %v592 = vsel %vm576, %v507, 128
    %v593 = vsel %vm577, %v508, 128
    %v594 = vsel %vm578, %v509, 128
    %v595 = vsel %vm579, %v510, 128
    %v596 = vsel %vm580, %v511, 128
    %v597 = vsel %vm581, %v512, 128
    %v598 = vsel %vm582, %v513, 128
    %v599 = vsel %vm583, %v514, 128
    %v600 = vsel %vm584, %v515, 128
    %vm601 = vcmp.lt.s32.totalorder %v585, %v589
    %v602 = vsel %vm601, %v585, %v589
    %vm603 = vcmp.lt.s32.totalorder %v586, %v590
    %v604 = vsel %vm603, %v586, %v590
    %vm605 = vcmp.lt.s32.totalorder %v587, %v591
    %v606 = vsel %vm605, %v587, %v591
    %vm607 = vcmp.lt.s32.totalorder %v588, %v592
    %v608 = vsel %vm607, %v588, %v592
    %vm609 = vcmp.lt.s32.totalorder %v602, %v593
    %v610 = vsel %vm609, %v602, %v593
    %vm611 = vcmp.lt.s32.totalorder %v604, %v594
    %v612 = vsel %vm611, %v604, %v594
    %vm613 = vcmp.lt.s32.totalorder %v606, %v595
    %v614 = vsel %vm613, %v606, %v595
    %vm615 = vcmp.lt.s32.totalorder %v608, %v596
    %v616 = vsel %vm615, %v608, %v596
    %vm617 = vcmp.lt.s32.totalorder %v610, %v597
    %v618 = vsel %vm617, %v610, %v597
    %vm619 = vcmp.lt.s32.totalorder %v612, %v598
    %v620 = vsel %vm619, %v612, %v598
    %vm621 = vcmp.lt.s32.totalorder %v614, %v599
    %v622 = vsel %vm621, %v614, %v599
    %vm623 = vcmp.lt.s32.totalorder %v616, %v600
    %v624 = vsel %vm623, %v616, %v600
    %vm625 = vcmp.lt.s32.totalorder %v618, %v620
    %v626 = vsel %vm625, %v618, %v620
    %vm627 = vcmp.lt.s32.totalorder %v622, %v624
    %v628 = vsel %vm627, %v622, %v624
    %vm629 = vcmp.lt.s32.totalorder %v626, %v628
    %v630 = vsel %vm629, %v626, %v628
    %v631 = vrot.slane %v630, 4
    %vm632 = vcmp.lt.s32.totalorder %v630, %v631
    %v633 = vsel %vm632, %v630, %v631
    %v634 = vrot.slane %v633, 2
    %vm635 = vcmp.lt.s32.totalorder %v633, %v634
    %v636 = vsel %vm635, %v633, %v634
    %v637 = vrot.slane %v636, 1
    %vm638 = vcmp.lt.s32.totalorder %v636, %v637
    %v639 = vsel %vm638, %v636, %v637
    %vm640 = vcmp.lt.s32.totalorder %v639, 7
    %v641 = vsel %vm640, %v639, 7
    %642 = vst [vmem:[#allocation11] sm:$0x1] %v641
    %v643 = vld [vmem:[#allocation8] sm:$0xff]
    %v644 = vld [vmem:[#allocation8 + $0x8] sm:$0xff]
    %v645 = vld [vmem:[#allocation8 + $0x10] sm:$0xff]
    %v646 = vld [vmem:[#allocation8 + $0x18] sm:$0xff]
    %v647 = vld [vmem:[#allocation8 + $0x20] sm:$0xff]
    %v648 = vld [vmem:[#allocation8 + $0x28] sm:$0xff]
    %v649 = vld [vmem:[#allocation8 + $0x30] sm:$0xff]
    %v650 = vld [vmem:[#allocation8 + $0x38] sm:$0xff]
    %v651 = vld [vmem:[#allocation8 + $0x40] sm:$0xff]
    %v652 = vld [vmem:[#allocation8 + $0x48] sm:$0xff]
    %v653 = vld [vmem:[#allocation8 + $0x50] sm:$0xff]
    %v654 = vld [vmem:[#allocation8 + $0x58] sm:$0xff]
    %v655 = vld [vmem:[#allocation8 + $0x60] sm:$0xff]
    %v656 = vld [vmem:[#allocation8 + $0x68] sm:$0xff]
    %v657 = vld [vmem:[#allocation8 + $0x70] sm:$0xff]
    %v658 = vld [vmem:[#allocation8 + $0x78] sm:$0xff]
    %v659 = vadd.f32 %v532, %v643
    %v660 = vadd.f32 %v533, %v644
    %v661 = vadd.f32 %v534, %v645
    %v662 = vadd.f32 %v535, %v646
    %v663 = vadd.f32 %v536, %v647
    %v664 = vadd.f32 %v537, %v648
    %v665 = vadd.f32 %v538, %v649
    %v666 = vadd.f32 %v539, %v650
    %v667 = vadd.f32 %v540, %v651
    %v668 = vadd.f32 %v541, %v652
    %v669 = vadd.f32 %v542, %v653
    %v670 = vadd.f32 %v543, %v654
    %v671 = vadd.f32 %v544, %v655
    %v672 = vadd.f32 %v545, %v656
    %v673 = vadd.f32 %v546, %v657
    %v674 = vadd.f32 %v547, %v658
    %v675 = vmax.f32 %v659, %v663
    %v676 = vmax.f32 %v660, %v664
    %v677 = vmax.f32 %v661, %v665
    %v678 = vmax.f32 %v662, %v666
    %v679 = vmax.f32 %v675, %v667
    %v680 = vmax.f32 %v676, %v668
    %v681 = vmax.f32 %v677, %v669
    %v682 = vmax.f32 %v678, %v670
    %v683 = vmax.f32 %v679, %v671
    %v684 = vmax.f32 %v680, %v672
    %v685 = vmax.f32 %v681, %v673
    %v686 = vmax.f32 %v682, %v674
    %v687 = vmax.f32 %v683, %v684
    %v688 = vmax.f32 %v685, %v686
    %v689 = vmax.f32 %v687, %v688
    %v690 = vrot.slane %v689, 4
    %v691 = vmax.f32 %v689, %v690
    %v692 = vrot.slane %v691, 2
    %v693 = vmax.f32 %v691, %v692
    %v694 = vrot.slane %v693, 1
    %v695 = vmax.f32 %v693, %v694
    %vm696 = vcmp.eq.f32.partialorder %v659, %v695
    %vm697 = vcmp.eq.f32.partialorder %v660, %v695
    %vm698 = vcmp.eq.f32.partialorder %v661, %v695
    %vm699 = vcmp.eq.f32.partialorder %v662, %v695
    %vm700 = vcmp.eq.f32.partialorder %v663, %v695
    %vm701 = vcmp.eq.f32.partialorder %v664, %v695
    %vm702 = vcmp.eq.f32.partialorder %v665, %v695
    %vm703 = vcmp.eq.f32.partialorder %v666, %v695
    %vm704 = vcmp.eq.f32.partialorder %v667, %v695
    %vm705 = vcmp.eq.f32.partialorder %v668, %v695
    %vm706 = vcmp.eq.f32.partialorder %v669, %v695
    %vm707 = vcmp.eq.f32.partialorder %v670, %v695
    %vm708 = vcmp.eq.f32.partialorder %v671, %v695
    %vm709 = vcmp.eq.f32.partialorder %v672, %v695
    %vm710 = vcmp.eq.f32.partialorder %v673, %v695
    %vm711 = vcmp.eq.f32.partialorder %v674, %v695
    %v712 = vsel %vm696, %v500, 128
    %v713 = vsel %vm697, %v501, 128
    %v714 = vsel %vm698, %v502, 128
    %v715 = vsel %vm699, %v503, 128
    %v716 = vsel %vm700, %v504, 128
    %v717 = vsel %vm701, %v505, 128
    %v718 = vsel %vm702, %v506, 128
    %v719 = vsel %vm703, %v507, 128
    %v720 = vsel %vm704, %v508, 128
    %v721 = vsel %vm705, %v509, 128
    %v722 = vsel %vm706, %v510, 128
    %v723 = vsel %vm707, %v511, 128
    %v724 = vsel %vm708, %v512, 128
    %v725 = vsel %vm709, %v513, 128
    %v726 = vsel %vm710, %v514, 128
    %v727 = vsel %vm711, %v515, 128
    %vm728 = vcmp.lt.s32.totalorder %v712, %v716
    %v729 = vsel %vm728, %v712, %v716
    %vm730 = vcmp.lt.s32.totalorder %v713, %v717
    %v731 = vsel %vm730, %v713, %v717
    %vm732 = vcmp.lt.s32.totalorder %v714, %v718
    %v733 = vsel %vm732, %v714, %v718
    %vm734 = vcmp.lt.s32.totalorder %v715, %v719
    %v735 = vsel %vm734, %v715, %v719
    %vm736 = vcmp.lt.s32.totalorder %v729, %v720
    %v737 = vsel %vm736, %v729, %v720
    %vm738 = vcmp.lt.s32.totalorder %v731, %v721
    %v739 = vsel %vm738, %v731, %v721
    %vm740 = vcmp.lt.s32.totalorder %v733, %v722
    %v741 = vsel %vm740, %v733, %v722
    %vm742 = vcmp.lt.s32.totalorder %v735, %v723
    %v743 = vsel %vm742, %v735, %v723
    %vm744 = vcmp.lt.s32.totalorder %v737, %v724
    %v745 = vsel %vm744, %v737, %v724
    %vm746 = vcmp.lt.s32.totalorder %v739, %v725
    %v747 = vsel %vm746, %v739, %v725
    %vm748 = vcmp.lt.s32.totalorder %v741, %v726
    %v749 = vsel %vm748, %v741, %v726
    %vm750 = vcmp.lt.s32.totalorder %v743, %v727
    %v751 = vsel %vm750, %v743, %v727
    %vm752 = vcmp.lt.s32.totalorder %v745, %v747
    %v753 = vsel %vm752, %v745, %v747
    %vm754 = vcmp.lt.s32.totalorder %v749, %v751
    %v755 = vsel %vm754, %v749, %v751
    %vm756 = vcmp.lt.s32.totalorder %v753, %v755
    %v757 = vsel %vm756, %v753, %v755
    %v758 = vrot.slane %v757, 4
    %vm759 = vcmp.lt.s32.totalorder %v757, %v758
    %v760 = vsel %vm759, %v757, %v758
    %v761 = vrot.slane %v760, 2
    %vm762 = vcmp.lt.s32.totalorder %v760, %v761
    %v763 = vsel %vm762, %v760, %v761
    %v764 = vrot.slane %v763, 1
    %vm765 = vcmp.lt.s32.totalorder %v763, %v764
    %v766 = vsel %vm765, %v763, %v764
    %vm767 = vcmp.lt.s32.totalorder %v766, 7
    %v768 = vsel %vm767, %v766, 7
    %769 = vst [vmem:[#allocation10] sm:$0x1] %v768
    // Predicated region
    $region42: #{tpu_custom_call.1} parent=1 // pred_check
      _
    $region43: #{tpu_custom_call.1} parent=1 // pred_check_branch
      %771 = sbr.rel (0) target = $region45
    $region44: #{tpu_custom_call.1} parent=1 // pred_region
      %s773 = ssub.s32 16, 16
      %774 = vsyncadd [#allocation4], %s773
      %s776 = sshll.u32 [#allocation10], 4
      %s777 = int_to_ptr.vmem [resolvable:$true] %s776
      %779 = dma.vmem_to_hbm [thread:$0]  %s777, 16, %s6, [#allocation4]
    $region45: #{tpu_custom_call.1} parent=1 // pred_fallthru
      _
    // Predicated region
    $region46: #{tpu_custom_call.1} parent=1 // pred_check
      _
    $region47: #{tpu_custom_call.1} parent=1 // pred_check_branch
      %781 = sbr.rel (0) target = $region49
    $region48: #{tpu_custom_call.1} parent=1 // pred_region
      %s783 = ssub.s32 16, 16
      %784 = vsyncadd [#allocation12], %s783
      %s786 = sshll.u32 [#allocation11], 4
      %s787 = int_to_ptr.vmem [resolvable:$true] %s786
      %789 = dma.vmem_to_hbm [thread:$0]  %s787, 16, %s7, [#allocation12]
    $region49: #{tpu_custom_call.1} parent=1 // pred_fallthru
      _
    // Predicated region
    $region50: #{tpu_custom_call.1} parent=1 // pred_check
      _
    $region51: #{tpu_custom_call.1} parent=1 // pred_check_branch
      %791 = sbr.rel (0) target = $region53
    $region52: #{tpu_custom_call.1} parent=1 // pred_region
      %792 = dma.done [#allocation4], 16
    $region53: #{tpu_custom_call.1} parent=1 // pred_fallthru
      _
    // Predicated region
    $region54: #{tpu_custom_call.1} parent=1 // pred_check
      _
    $region55: #{tpu_custom_call.1} parent=1 // pred_check_branch
      %794 = sbr.rel (0) target = $region57
    $region56: #{tpu_custom_call.1} parent=1 // pred_region
      %795 = dma.done [#allocation12], 16
    $region57: #{tpu_custom_call.1} parent=1 // pred_fallthru
      _
    %796 = vsyncpa [#allocation3], 1
    %797 = vsyncpa [#allocation6], 1
    %798 = vsyncpa [#allocation9], 1
    %799 = vsyncpa [#allocation4], 1
    %800 = vsyncpa [#allocation12], 1

</llo_original>
